<compile_context>
chip_gen: v7x
topology: tpu7x:2x2x1
jax: 0.10.0
libtpu: 0.0.40
codegen_flags: <defaults>
</compile_context>

<pallas_src>
import functools

import jax
import jax.numpy as jnp
from jax.experimental import pallas as pl
from jax.experimental.pallas import tpu as pltpu

LANES = 128
SUBLANES = 8
# ~2 MiB of input bytes per operand per block: 4096 rows (f32), 8192 (bf16).
# Double-buffered inputs: 2 ops x 2 bufs x 2 MiB = 8 MiB -> fits every gen.
TARGET_BLOCK_BYTES = 2 * 1024 * 1024
VMEM_LIMIT_BYTES = 48 * 1024 * 1024  # headroom for f32 temps; < v7x physical 64 MiB


def _round_up(x, m):
    return ((x + m - 1) // m) * m


def _absdiff(a_ref, b_ref):
    # Cast in-register (VPU); avoids doubling HBM traffic for bf16/f16 inputs.
    return jnp.abs(a_ref[...].astype(jnp.float32) - b_ref[...].astype(jnp.float32))


def _fold(x, op):
    # (row_tile, 128) -> (8, 128): pure VPU elementwise fold over vreg slabs.
    return op(x.reshape(-1, SUBLANES, LANES), axis=0)


def _absmax_kernel(a_ref, b_ref, out_ref, *, rows, row_tile):
    """Per-tile partial max of |a - b| -> out[t] : (8, 128)."""
    t = pl.program_id(0)
    base = t * row_tile
    d = _absdiff(a_ref, b_ref)

    @pl.when(base + row_tile <= rows)          # full tile: no masking needed
    def _full():
        out_ref[...] = _fold(d, jnp.max)[None]

    @pl.when(base + row_tile > rows)           # tile containing the ragged tail
    def _tail():
        gid = base + jax.lax.broadcasted_iota(jnp.int32, d.shape, 0)
        dm = jnp.where(gid < rows, d, 0.0)     # 0 never affects max(|.|) >= 0
        out_ref[...] = _fold(dm, jnp.max)[None]


def _berhu_sum_kernel(scal_ref, a_ref, b_ref, out_ref, *, rows, row_tile):
    """Per-tile partial sum of berHu(|a - b|) -> out[t] : (8, 128)."""
    t = pl.program_id(0)
    base = t * row_tile
    d = _absdiff(a_ref, b_ref)

    c = scal_ref[0]        # 0.2 * max|a - b|
    inv_2c = scal_ref[1]   # 0.5 / c   (computed once in JAX, SMEM scalar)
    half_c = scal_ref[2]   # 0.5 * c

    def berhu(x):
        # (x^2 + c^2) / (2c) == x*x*(0.5/c) + 0.5*c ; c == 0 -> NaN (matches ref)
        return jnp.where(x < c, x, x * x * inv_2c + half_c)

    @pl.when(base + row_tile <= rows)
    def _full():
        out_ref[...] = _fold(berhu(d), jnp.sum)[None]

    @pl.when(base + row_tile > rows)
    def _tail():
        gid = base + jax.lax.broadcasted_iota(jnp.int32, d.shape, 0)
        dm = jnp.where(gid < rows, d, 0.0)     # berhu(0) == 0 for c > 0
        out_ref[...] = _fold(berhu(dm), jnp.sum)[None]


def reverse_huber_loss(depth_est, depth_gt):
    """berHu loss; inputs are same-shape arrays (e.g. NCHW depth maps)."""
    assert depth_est.shape == depth_gt.shape
    a = depth_est.reshape(-1)
    b = depth_gt.reshape(-1)
    total = a.size

    if total % LANES != 0:
        # TODO(synk): lane-level tail masking would avoid this (rare) copy;
        # it only triggers when the element count is not a multiple of 128.
        pad = LANES - total % LANES
        a = jnp.pad(a, (0, pad))
        b = jnp.pad(b, (0, pad))
    rows = a.size // LANES

    itemsize = jnp.dtype(a.dtype).itemsize
    tile_rows = max(32, (TARGET_BLOCK_BYTES // (LANES * itemsize)) // 32 * 32)
    row_tile = min(tile_rows, _round_up(rows, 32))
    num_tiles = pl.cdiv(rows, row_tile)

    a2 = a.reshape(rows, LANES)
    b2 = b.reshape(rows, LANES)

    tile_spec = pl.BlockSpec((row_tile, LANES), lambda t: (t, 0))
    part_spec = pl.BlockSpec((1, SUBLANES, LANES), lambda t: (t, 0, 0))
    part_shape = jax.ShapeDtypeStruct((num_tiles, SUBLANES, LANES), jnp.float32)
    cparams = pltpu.CompilerParams(
        dimension_semantics=("parallel",),     # v7x: tiles split across both TCs
        vmem_limit_bytes=VMEM_LIMIT_BYTES)

    # ---- pass 1: global max of |a - b| ---------------------------------
    partial_max = pl.pallas_call(
        functools.partial(_absmax_kernel, rows=rows, row_tile=row_tile),
        out_shape=part_shape,
        grid=(num_tiles,),
        in_specs=[tile_spec, tile_spec],
        out_specs=part_spec,
        compiler_params=cparams,
    )(a2, b2)

    c = 0.2 * jnp.max(partial_max)
    scalars = jnp.stack([c, 0.5 / c, 0.5 * c]).astype(jnp.float32)

    # ---- pass 2: berHu partial sums -------------------------------------
    partial_sum = pl.pallas_call(
        functools.partial(_berhu_sum_kernel, rows=rows, row_tile=row_tile),
        out_shape=part_shape,
        grid=(num_tiles,),
        in_specs=[pl.BlockSpec(memory_space=pltpu.MemorySpace.SMEM),
                  tile_spec, tile_spec],
        out_specs=part_spec,
        compiler_params=cparams,
    )(scalars, a2, b2)

    return jnp.sum(partial_sum) / jnp.float32(total)


def _reference(depth_est, depth_gt):
    a = depth_est.astype(jnp.float32)
    b = depth_gt.astype(jnp.float32)
    absdiff = jnp.abs(a - b)
    c = 0.2 * jnp.max(absdiff)
    return jnp.mean(jnp.where(absdiff < c, absdiff,
                              (absdiff * absdiff + c * c) / (2.0 * c)))


if __name__ == "__main__":
    key = jax.random.PRNGKey(0)
    k1, k2 = jax.random.split(key)

    # Small NCHW-style depth maps: batch=2, channels=4, spatial=16x16.
    # 2048 elements -> 16 rows of 128 -> exercises the in-kernel tail mask.
    shape = (2, 4, 16, 16)
    depth_est = jax.random.uniform(k1, shape, dtype=jnp.float32) * 10.0
    depth_gt = jax.random.uniform(k2, shape, dtype=jnp.float32) * 10.0

    out = jax.block_until_ready(reverse_huber_loss(depth_est, depth_gt))
    ref = _reference(depth_est, depth_gt)
    assert jnp.allclose(out, ref, rtol=1e-5, atol=1e-5), (out, ref)

    # Second check: 4*4*256*256 = 1,048,576 elements -> 8192 rows -> two full
    # 4096-row tiles (exercises the full-tile path and the multi-tile grid).
    k3, k4 = jax.random.split(k2)
    shape2 = (4, 4, 256, 256)
    e2 = jax.random.uniform(k3, shape2, dtype=jnp.float32) * 10.0
    g2 = jax.random.uniform(k4, shape2, dtype=jnp.float32) * 10.0
    out2 = jax.block_until_ready(reverse_huber_loss(e2, g2))
    ref2 = _reference(e2, g2)
    assert jnp.allclose(out2, ref2, rtol=2e-4, atol=1e-6), (out2, ref2)

    print("KERNEL_OK")
</pallas_src>

<mosaic_0001>
module attributes {stable_mosaic.version = 11 : i64} {
  func.func @_absmax_kernel(%arg0: i32, %arg1: memref<32x128xf32, #tpu.memory_space<vmem>>, %arg2: memref<32x128xf32, #tpu.memory_space<vmem>>, %arg3: memref<1x8x128xf32, #tpu.memory_space<vmem>>) attributes {dimension_semantics = [#tpu.dimension_semantics<parallel>], iteration_bounds = array<i64: 1>, scalar_prefetch = 0 : i64, scratch_operands = 0 : i64, tpu.core_type = #tpu.core_type<tc>, window_params = [{transform_indices = @transform_0, window_bounds = array<i64: 32, 128>}, {transform_indices = @transform_1, window_bounds = array<i64: 32, 128>}, {transform_indices = @transform_2, window_bounds = array<i64: 1, 8, 128>}]} {
    %c32_i32 = arith.constant 32 : i32
    %0 = arith.muli %arg0, %c32_i32 : i32
    %c0 = arith.constant 0 : index
    %c0_0 = arith.constant 0 : index
    %1 = vector.load %arg1[%c0, %c0_0] : memref<32x128xf32, #tpu.memory_space<vmem>>, vector<32x128xf32>
    %c0_1 = arith.constant 0 : index
    %c0_2 = arith.constant 0 : index
    %2 = vector.load %arg2[%c0_1, %c0_2] : memref<32x128xf32, #tpu.memory_space<vmem>>, vector<32x128xf32>
    %3 = arith.subf %1, %2 : vector<32x128xf32>
    %4 = math.absf %3 : vector<32x128xf32>
    %c32_i32_3 = arith.constant 32 : i32
    %5 = arith.addi %0, %c32_i32_3 : i32
    %c16_i32 = arith.constant 16 : i32
    %6 = arith.cmpi sle, %5, %c16_i32 : i32
    %7 = arith.extui %6 : i1 to i32
    %c0_i32 = arith.constant 0 : i32
    %8 = arith.cmpi ne, %7, %c0_i32 : i32
    scf.if %8 {
      %13 = vector.shape_cast %4 : vector<32x128xf32> to vector<4x8x128xf32>
      %cst = arith.constant dense<0xFF800000> : vector<8x128xf32>
      %14 = vector.multi_reduction <maximumf>, %13, %cst [0] : vector<4x8x128xf32> to vector<8x128xf32>
      %15 = vector.shape_cast %14 : vector<8x128xf32> to vector<1x8x128xf32>
      %c0_7 = arith.constant 0 : index
      %c0_8 = arith.constant 0 : index
      %c0_9 = arith.constant 0 : index
      %16 = vector.load %arg3[%c0_7, %c0_8, %c0_9] : memref<1x8x128xf32, #tpu.memory_space<vmem>>, vector<1x8x128xf32>
      tpu.vector_store %arg3[%c0_7, %c0_8, %c0_9], %15 {strides = array<i32>} : memref<1x8x128xf32, #tpu.memory_space<vmem>>, vector<1x8x128xf32>,
    } else {
    }
    %c32_i32_4 = arith.constant 32 : i32
    %9 = arith.addi %0, %c32_i32_4 : i32
    %c16_i32_5 = arith.constant 16 : i32
    %10 = arith.cmpi sgt, %9, %c16_i32_5 : i32
    %11 = arith.extui %10 : i1 to i32
    %c0_i32_6 = arith.constant 0 : i32
    %12 = arith.cmpi ne, %11, %c0_i32_6 : i32
    scf.if %12 {
      %13 = tpu.iota {dimensions = array<i32: 0>} : vector<32x128xi32>
      %14 = vector.broadcast %0 : i32 to vector<32x128xi32>
      %15 = arith.addi %14, %13 : vector<32x128xi32>
      %c16_i32_7 = arith.constant 16 : i32
      %16 = vector.broadcast %c16_i32_7 : i32 to vector<32x128xi32>
      %17 = arith.cmpi slt, %15, %16 : vector<32x128xi32>
      %cst = arith.constant 0.000000e+00 : f32
      %18 = vector.broadcast %cst : f32 to vector<32x128xf32>
      %19 = arith.select %17, %4, %18 : vector<32x128xi1>, vector<32x128xf32>
      %20 = vector.shape_cast %19 : vector<32x128xf32> to vector<4x8x128xf32>
      %cst_8 = arith.constant dense<0xFF800000> : vector<8x128xf32>
      %21 = vector.multi_reduction <maximumf>, %20, %cst_8 [0] : vector<4x8x128xf32> to vector<8x128xf32>
      %22 = vector.shape_cast %21 : vector<8x128xf32> to vector<1x8x128xf32>
      %c0_9 = arith.constant 0 : index
      %c0_10 = arith.constant 0 : index
      %c0_11 = arith.constant 0 : index
      %23 = vector.load %arg3[%c0_9, %c0_10, %c0_11] : memref<1x8x128xf32, #tpu.memory_space<vmem>>, vector<1x8x128xf32>
      tpu.vector_store %arg3[%c0_9, %c0_10, %c0_11], %22 {strides = array<i32>} : memref<1x8x128xf32, #tpu.memory_space<vmem>>, vector<1x8x128xf32>,
    } else {
    }
    return
  }
  func.func @transform_0(%arg0: i32) -> (i32, i32) {
    %c0_i32 = arith.constant 0 : i32
    %c0_i32_0 = arith.constant 0 : i32
    return %arg0, %c0_i32 : i32, i32
  }
  func.func @transform_1(%arg0: i32) -> (i32, i32) {
    %c0_i32 = arith.constant 0 : i32
    %c0_i32_0 = arith.constant 0 : i32
    return %arg0, %c0_i32 : i32, i32
  }
  func.func @transform_2(%arg0: i32) -> (i32, i32, i32) {
    %c0_i32 = arith.constant 0 : i32
    %c0_i32_0 = arith.constant 0 : i32
    %c0_i32_1 = arith.constant 0 : i32
    return %arg0, %c0_i32, %c0_i32_0 : i32, i32, i32
  }
}

</mosaic_0001>

<llo_original>
// kernel: tpu_custom_call.1
$region0: #{tpu_custom_call.1}
  #allocation0 [shape = 'u32[]', space=smem, size = 0x4, offset = 0x4, fixed_abs, tag = 'smem constant byte address 0x4 - core index']
  #allocation1 [shape = 'u32[144,128]{1,0:T(1,128)}', space=vmem, size = 0x12000, scoped, tag = 'internal scratch']
  %s0 = inlined_call_operand.hbm [shape: f32[16,128], index: 0, kind: input, shape index: {}]
  %s1 = inlined_call_operand.hbm [shape: f32[16,128], index: 1, kind: input, shape index: {}]
  %s2 = inlined_call_operand.hbm [shape: f32[1,8,128], index: 2, kind: output, shape index: {}]
  %s3 = sld [smem:[#allocation0]]
  $region34: #{tpu_custom_call.1} parent=0
    _
  %s5 = ssub.s32 1, %s3
  %s6 = scalar_select 0, %s5, %s3
  $region1: #{tpu_custom_call.1} parent=0
    #allocation2 [shape = 'u8[16384]{0}', space=vmem, size = 0x4000, scoped, tag = 'input window, operand 0, single buffered']
    #allocation3 [shape = 's32[1]{0}', space=sflag, size = 0x4, scoped, tag = 'scoped memory for tpu_custom_call.1']
    #allocation4 [shape = 's32[1]{0}', space=sflag, size = 0x4, scoped, tag = 'scoped memory for tpu_custom_call.1']
    #allocation5 [shape = 'u8[16384]{0}', space=vmem, size = 0x4000, scoped, tag = 'input window, operand 1, single buffered']
    #allocation6 [shape = 's32[1]{0}', space=sflag, size = 0x4, scoped, tag = 'scoped memory for tpu_custom_call.1']
    #allocation7 [shape = 'u8[4096]{0}', space=vmem, size = 0x1000, scoped, tag = 'output window, operand 0, single buffered']
    %7 = vsyncpa [#allocation3], 0
    %8 = vsyncpa [#allocation6], 0
    %9 = vsyncpa [#allocation4], 0
    // Predicated region
    $region2: #{tpu_custom_call.1} parent=1 // pred_check
      _
    $region3: #{tpu_custom_call.1} parent=1 // pred_check_branch
      %11 = sbr.rel (0) target = $region5
    $region4: #{tpu_custom_call.1} parent=1 // pred_region
      %s13 = ssub.s32 512, 256
      %14 = vsyncadd [#allocation3], %s13
      %s15 = sshll.u32 [#allocation2], 4
      %s16 = int_to_ptr.vmem [resolvable:$true] %s15
      %21 = dma.hbm_to_vmem [thread:$0]  %s0, 256, %s16, [#allocation3], 128, 128, 8
    $region5: #{tpu_custom_call.1} parent=1 // pred_fallthru
      _
    // Predicated region
    $region6: #{tpu_custom_call.1} parent=1 // pred_check
      _
    $region7: #{tpu_custom_call.1} parent=1 // pred_check_branch
      %23 = sbr.rel (0) target = $region9
    $region8: #{tpu_custom_call.1} parent=1 // pred_region
      %s25 = ssub.s32 512, 256
      %26 = vsyncadd [#allocation6], %s25
      %s27 = sshll.u32 [#allocation5], 4
      %s28 = int_to_ptr.vmem [resolvable:$true] %s27
      %33 = dma.hbm_to_vmem [thread:$0]  %s1, 256, %s28, [#allocation6], 128, 128, 8
    $region9: #{tpu_custom_call.1} parent=1 // pred_fallthru
      _
    // Predicated region
    $region10: #{tpu_custom_call.1} parent=1 // pred_check
      _
    $region11: #{tpu_custom_call.1} parent=1 // pred_check_branch
      %35 = sbr.rel (0) target = $region13
    $region12: #{tpu_custom_call.1} parent=1 // pred_region
      %36 = dma.done [#allocation3], 512
    $region13: #{tpu_custom_call.1} parent=1 // pred_fallthru
      _
    // Predicated region
    $region14: #{tpu_custom_call.1} parent=1 // pred_check
      _
    $region15: #{tpu_custom_call.1} parent=1 // pred_check_branch
      %38 = sbr.rel (0) target = $region17
    $region16: #{tpu_custom_call.1} parent=1 // pred_region
      %39 = dma.done [#allocation6], 512
    $region17: #{tpu_custom_call.1} parent=1 // pred_fallthru
      _
    %s40 = smul.u32 0, 32
    %v41 = vld [vmem:[#allocation2] sm:$0xff]
    %v42 = vld [vmem:[#allocation2 + $0x8] sm:$0xff]
    %v43 = vld [vmem:[#allocation2 + $0x10] sm:$0xff]
    %v44 = vld [vmem:[#allocation2 + $0x18] sm:$0xff]
    %v45 = vld [vmem:[#allocation5] sm:$0xff]
    %v46 = vld [vmem:[#allocation5 + $0x8] sm:$0xff]
    %v47 = vld [vmem:[#allocation5 + $0x10] sm:$0xff]
    %v48 = vld [vmem:[#allocation5 + $0x18] sm:$0xff]
    %v49 = vsub.f32 %v41, %v45
    %v50 = vsub.f32 %v42, %v46
    %v51 = vsub.f32 %v43, %v47
    %v52 = vsub.f32 %v44, %v48
    %v53 = vand.u32 2147483647, %v49
    %v54 = vand.u32 2147483647, %v50
    %v55 = vand.u32 2147483647, %v51
    %v56 = vand.u32 2147483647, %v52
    %s57 = sadd.s32 %s40, 32
    %p58 = scmp.le.s32.totalorder %s57, 16
    // Predicated region
    $region18: #{tpu_custom_call.1} parent=1 // pred_check
      %p59 = pneg %p58
    $region19: #{tpu_custom_call.1} parent=1 // pred_check_branch
      %61 = sbr.rel (%p59) target = $region21
    $region20: #{tpu_custom_call.1} parent=1 // pred_region
      %v62 = vmax.f32 %v53, %v54
      %v63 = vmax.f32 %v55, %v56
      %v64 = vmax.f32 %v62, %v63
      %65 = vst [vmem:[#allocation7] sm:$0xff] %v64
    $region21: #{tpu_custom_call.1} parent=1 // pred_fallthru
      _
    %p66 = scmp.gt.s32.totalorder %s57, 16
    // Predicated region
    $region22: #{tpu_custom_call.1} parent=1 // pred_check
      %p67 = pneg %p66
    $region23: #{tpu_custom_call.1} parent=1 // pred_check_branch
      %69 = sbr.rel (%p67) target = $region25
    $region24: #{tpu_custom_call.1} parent=1 // pred_region
      %v70 = vlaneseq
      %v71 = vshrl.u32 %v70, 7
      %v72 = vadd.s32 %v71, 8
      %v73 = vadd.s32 %v71, 16
      %v74 = vadd.s32 %v71, 24
      %v75 = vstv %s40
      %v76 = vadd.s32 %v75, %v71
      %v77 = vadd.s32 %v75, %v72
      %v78 = vadd.s32 %v75, %v73
      %v79 = vadd.s32 %v75, %v74
      %vm80 = vcmp.lt.s32.totalorder %v76, 16
      %vm81 = vcmp.lt.s32.totalorder %v77, 16
      %vm82 = vcmp.lt.s32.totalorder %v78, 16
      %vm83 = vcmp.lt.s32.totalorder %v79, 16
      %v84 = vsel %vm80, %v53, 0.0
      %v85 = vsel %vm81, %v54, 0.0
      %v86 = vsel %vm82, %v55, 0.0
      %v87 = vsel %vm83, %v56, 0.0
      %v88 = vmax.f32 %v84, %v85
      %v89 = vmax.f32 %v86, %v87
      %v90 = vmax.f32 %v88, %v89
      %91 = vst [vmem:[#allocation7] sm:$0xff] %v90
    $region25: #{tpu_custom_call.1} parent=1 // pred_fallthru
      _
    // Predicated region
    $region26: #{tpu_custom_call.1} parent=1 // pred_check
      _
    $region27: #{tpu_custom_call.1} parent=1 // pred_check_branch
      %93 = sbr.rel (0) target = $region29
    $region28: #{tpu_custom_call.1} parent=1 // pred_region
      %s95 = ssub.s32 128, 128
      %96 = vsyncadd [#allocation4], %s95
      %s98 = sshll.u32 [#allocation7], 4
      %s99 = int_to_ptr.vmem [resolvable:$true] %s98
      %101 = dma.vmem_to_hbm [thread:$0]  %s99, 128, %s2, [#allocation4]
    $region29: #{tpu_custom_call.1} parent=1 // pred_fallthru
      _
    // Predicated region
    $region30: #{tpu_custom_call.1} parent=1 // pred_check
      _
    $region31: #{tpu_custom_call.1} parent=1 // pred_check_branch
      %103 = sbr.rel (0) target = $region33
    $region32: #{tpu_custom_call.1} parent=1 // pred_region
      %104 = dma.done [#allocation4], 128
    $region33: #{tpu_custom_call.1} parent=1 // pred_fallthru
      _
    %105 = vsyncpa [#allocation3], 1
    %106 = vsyncpa [#allocation6], 1
    %107 = vsyncpa [#allocation4], 1

</llo_original>
